<compile_context>
chip_gen: v7x
topology: tpu7x:2x2x1
jax: 0.10.0
libtpu: 0.0.40
codegen_flags: <defaults>
</compile_context>

<pallas_src>
import jax
import jax.numpy as jnp
from jax.experimental import pallas as pl
from jax.experimental.pallas import tpu as pltpu

_TB_CAP = 1024  # max batch (M) tile


def mlp_kernel(x_ref,
               w1_ref, b1_ref,
               w2_ref, b2_ref,
               w3_ref, b3_ref,
               w4_ref, b4_ref,
               o_ref):
    # x tile arrives as f32 straight from HBM (single pass over the input);
    # cast to bf16 on the VPU so the matmuls feed the bf16 MXU.
    x = x_ref[...].astype(jnp.bfloat16)

    # Layer 1: (TB,784) @ (784,256) -> f32 acc, +bias, ReLU, cast to bf16.
    h1 = jnp.dot(x, w1_ref[...], preferred_element_type=jnp.float32) + b1_ref[...]
    h1 = jnp.maximum(h1, 0.0).astype(jnp.bfloat16)

    # Layer 2: (TB,256) @ (256,128)
    h2 = jnp.dot(h1, w2_ref[...], preferred_element_type=jnp.float32) + b2_ref[...]
    h2 = jnp.maximum(h2, 0.0).astype(jnp.bfloat16)

    # Layer 3: (TB,128) @ (128,64)
    h3 = jnp.dot(h2, w3_ref[...], preferred_element_type=jnp.float32) + b3_ref[...]
    h3 = jnp.maximum(h3, 0.0).astype(jnp.bfloat16)

    # Layer 4: (TB,64) @ (64,10) -> logits in f32
    logits = jnp.dot(h3, w4_ref[...], preferred_element_type=jnp.float32) + b4_ref[...]

    # Numerically stable softmax over dim=1; reciprocal goes to the EUP slot.
    m = jnp.max(logits, axis=-1, keepdims=True)
    e = jnp.exp(logits - m)
    denom = jnp.sum(e, axis=-1, keepdims=True)
    o_ref[...] = (e * pl.reciprocal(denom, approx=True)).astype(o_ref.dtype)


def _pick_tb(B):
    """Static (trace-time) batch-tile choice.
    - B <= 512: one exact-fit tile (block == full dim is always legal).
    - 512 < B <= 2048: ~half the batch, 256-aligned -> >= 2 grid steps so
      dimension_semantics=('parallel',) can shard across both v7x TCs.
    - B > 2048: 1024 (tile-sweep sweet spot; amortizes grid overhead)."""
    if B <= 512:
        return B
    if B <= 2 * _TB_CAP:
        half = -(-B // 2)                                  # ceil(B / 2)
        return min(_TB_CAP, ((half + 255) // 256) * 256)
    return _TB_CAP


@jax.jit
def mlp_forward(x, params):
    """x: (B, 784) float32.
    params: w{k} transposed vs. PyTorch, stored bf16, shape (in, out);
            b{k} float32, shape (1, out)."""
    B = x.shape[0]
    TB = _pick_tb(B)
    grid = (pl.cdiv(B, TB),)

    def resident(arr):
        # Full-array block, same block index every step -> stays in VMEM.
        return pl.BlockSpec(arr.shape, lambda i: (0, 0))

    in_specs = [
        pl.BlockSpec((TB, 784), lambda i: (i, 0)),          # x tile (f32)
        resident(params["w1"]), resident(params["b1"]),
        resident(params["w2"]), resident(params["b2"]),
        resident(params["w3"]), resident(params["b3"]),
        resident(params["w4"]), resident(params["b4"]),
    ]

    flops = 2 * B * (784 * 256 + 256 * 128 + 128 * 64 + 64 * 10)
    weight_bytes = sum(int(v.size) * v.dtype.itemsize for v in params.values())
    cost = pl.CostEstimate(
        flops=flops,
        transcendentals=B * 11,                             # exp x10 + recip
        bytes_accessed=B * 784 * 4 + B * 10 * 4 + weight_bytes,
    )

    out = pl.pallas_call(
        mlp_kernel,
        out_shape=jax.ShapeDtypeStruct((B, 10), jnp.float32),
        grid=grid,
        in_specs=in_specs,
        out_specs=pl.BlockSpec((TB, 10), lambda i: (i, 0)),
        compiler_params=pltpu.CompilerParams(
            dimension_semantics=("parallel",),
        ),
        cost_estimate=cost,
    )(x,
      params["w1"], params["b1"],
      params["w2"], params["b2"],
      params["w3"], params["b3"],
      params["w4"], params["b4"])

    return out


def init_params(key):
    """Deterministic init mimicking PyTorch nn.Linear default:
    U(-1/sqrt(fan_in), 1/sqrt(fan_in)) for both weight and bias.
    Weights stored transposed, (in_features, out_features); biases (1, out)."""
    dims = [(784, 256), (256, 128), (128, 64), (64, 10)]
    params = {}
    keys = jax.random.split(key, 2 * len(dims))
    for i, (fan_in, fan_out) in enumerate(dims):
        bound = 1.0 / jnp.sqrt(jnp.float32(fan_in))
        w = jax.random.uniform(keys[2 * i], (fan_in, fan_out),
                               dtype=jnp.float32, minval=-bound, maxval=bound)
        b = jax.random.uniform(keys[2 * i + 1], (1, fan_out),
                               dtype=jnp.float32, minval=-bound, maxval=bound)
        params[f"w{i + 1}"] = w
        params[f"b{i + 1}"] = b
    return params


def reference_forward(x, params_f32):
    h = x
    for i in range(1, 4):
        h = jnp.maximum(h @ params_f32[f"w{i}"] + params_f32[f"b{i}"], 0.0)
    logits = h @ params_f32["w4"] + params_f32["b4"]
    return jax.nn.softmax(logits, axis=1)


if __name__ == "__main__":
    key = jax.random.PRNGKey(0)
    pkey, xkey = jax.random.split(key)

    params_f32 = init_params(pkey)
    # Cast weights to bf16 once here (MXU is a bf16 engine); biases stay f32.
    params = {k: (v.astype(jnp.bfloat16) if k.startswith("w") else v)
              for k, v in params_f32.items()}

    batch = 8
    x = jax.random.normal(xkey, (batch, 784), dtype=jnp.float32)

    y = mlp_forward(x, params)
    y = jax.block_until_ready(y)

    # Sanity check against a pure-JAX f32 reference (loosened tolerances for
    # the bf16 matmuls + approx reciprocal).
    y_ref = reference_forward(x, params_f32)
    assert y.shape == (batch, 10)
    assert jnp.allclose(jnp.sum(y, axis=1), 1.0, atol=1e-2)
    assert jnp.allclose(y, y_ref, atol=3e-2, rtol=3e-2)

    print("KERNEL_OK")
</pallas_src>

<mosaic_0001>
module attributes {stable_mosaic.version = 11 : i64} {
  func.func @mlp_kernel(%arg0: i32, %arg1: memref<8x784xf32, #tpu.memory_space<vmem>>, %arg2: memref<784x256xbf16, #tpu.memory_space<vmem>>, %arg3: memref<1x256xf32, #tpu.memory_space<vmem>>, %arg4: memref<256x128xbf16, #tpu.memory_space<vmem>>, %arg5: memref<1x128xf32, #tpu.memory_space<vmem>>, %arg6: memref<128x64xbf16, #tpu.memory_space<vmem>>, %arg7: memref<1x64xf32, #tpu.memory_space<vmem>>, %arg8: memref<64x10xbf16, #tpu.memory_space<vmem>>, %arg9: memref<1x10xf32, #tpu.memory_space<vmem>>, %arg10: memref<8x10xf32, #tpu.memory_space<vmem>>) attributes {dimension_semantics = [#tpu.dimension_semantics<parallel>], iteration_bounds = array<i64: 1>, scalar_prefetch = 0 : i64, scratch_operands = 0 : i64, tpu.core_type = #tpu.core_type<tc>, window_params = [{transform_indices = @transform_0, window_bounds = array<i64: 8, 784>}, {pipeline_mode = #tpu.pipeline_mode<synchronous>, transform_indices = @transform_1, window_bounds = array<i64: 784, 256>}, {pipeline_mode = #tpu.pipeline_mode<synchronous>, transform_indices = @transform_2, window_bounds = array<i64: 1, 256>}, {pipeline_mode = #tpu.pipeline_mode<synchronous>, transform_indices = @transform_3, window_bounds = array<i64: 256, 128>}, {pipeline_mode = #tpu.pipeline_mode<synchronous>, transform_indices = @transform_4, window_bounds = array<i64: 1, 128>}, {pipeline_mode = #tpu.pipeline_mode<synchronous>, transform_indices = @transform_5, window_bounds = array<i64: 128, 64>}, {pipeline_mode = #tpu.pipeline_mode<synchronous>, transform_indices = @transform_6, window_bounds = array<i64: 1, 64>}, {pipeline_mode = #tpu.pipeline_mode<synchronous>, transform_indices = @transform_7, window_bounds = array<i64: 64, 10>}, {pipeline_mode = #tpu.pipeline_mode<synchronous>, transform_indices = @transform_8, window_bounds = array<i64: 1, 10>}, {transform_indices = @transform_9, window_bounds = array<i64: 8, 10>}]} {
    %c0 = arith.constant 0 : index
    %c0_0 = arith.constant 0 : index
    %0 = vector.load %arg1[%c0, %c0_0] : memref<8x784xf32, #tpu.memory_space<vmem>>, vector<8x784xf32>
    %1 = arith.truncf %0 : vector<8x784xf32> to vector<8x784xbf16>
    %c0_1 = arith.constant 0 : index
    %c0_2 = arith.constant 0 : index
    %2 = vector.load %arg2[%c0_1, %c0_2] : memref<784x256xbf16, #tpu.memory_space<vmem>>, vector<784x256xbf16>
    %cst = arith.constant dense<0.000000e+00> : vector<8x256xf32>
    %3 = tpu.matmul %1, %2, %cst {dimension_numbers = #tpu.dot_dimension_numbers<[1], [0], [0], [1], [0, 0, 1, 1], [], []>} : vector<8x784xbf16>, vector<784x256xbf16>, vector<8x256xf32> -> vector<8x256xf32>
    %c0_3 = arith.constant 0 : index
    %c0_4 = arith.constant 0 : index
    %4 = vector.load %arg3[%c0_3, %c0_4] : memref<1x256xf32, #tpu.memory_space<vmem>>, vector<1x256xf32>
    %5 = vector.broadcast %4 : vector<1x256xf32> to vector<8x256xf32>
    %6 = arith.addf %3, %5 : vector<8x256xf32>
    %cst_5 = arith.constant 0.000000e+00 : f32
    %7 = vector.broadcast %cst_5 : f32 to vector<8x256xf32>
    %8 = arith.maximumf %6, %7 : vector<8x256xf32>
    %9 = arith.truncf %8 : vector<8x256xf32> to vector<8x256xbf16>
    %c0_6 = arith.constant 0 : index
    %c0_7 = arith.constant 0 : index
    %10 = vector.load %arg4[%c0_6, %c0_7] : memref<256x128xbf16, #tpu.memory_space<vmem>>, vector<256x128xbf16>
    %cst_8 = arith.constant dense<0.000000e+00> : vector<8x128xf32>
    %11 = tpu.matmul %9, %10, %cst_8 {dimension_numbers = #tpu.dot_dimension_numbers<[1], [0], [0], [1], [0, 0, 1, 1], [], []>} : vector<8x256xbf16>, vector<256x128xbf16>, vector<8x128xf32> -> vector<8x128xf32>
    %c0_9 = arith.constant 0 : index
    %c0_10 = arith.constant 0 : index
    %12 = vector.load %arg5[%c0_9, %c0_10] : memref<1x128xf32, #tpu.memory_space<vmem>>, vector<1x128xf32>
    %13 = vector.broadcast %12 : vector<1x128xf32> to vector<8x128xf32>
    %14 = arith.addf %11, %13 : vector<8x128xf32>
    %cst_11 = arith.constant 0.000000e+00 : f32
    %15 = vector.broadcast %cst_11 : f32 to vector<8x128xf32>
    %16 = arith.maximumf %14, %15 : vector<8x128xf32>
    %17 = arith.truncf %16 : vector<8x128xf32> to vector<8x128xbf16>
    %c0_12 = arith.constant 0 : index
    %c0_13 = arith.constant 0 : index
    %18 = vector.load %arg6[%c0_12, %c0_13] : memref<128x64xbf16, #tpu.memory_space<vmem>>, vector<128x64xbf16>
    %cst_14 = arith.constant dense<0.000000e+00> : vector<8x64xf32>
    %19 = tpu.matmul %17, %18, %cst_14 {dimension_numbers = #tpu.dot_dimension_numbers<[1], [0], [0], [1], [0, 0, 1, 1], [], []>} : vector<8x128xbf16>, vector<128x64xbf16>, vector<8x64xf32> -> vector<8x64xf32>
    %c0_15 = arith.constant 0 : index
    %c0_16 = arith.constant 0 : index
    %20 = vector.load %arg7[%c0_15, %c0_16] : memref<1x64xf32, #tpu.memory_space<vmem>>, vector<1x64xf32>
    %21 = vector.broadcast %20 : vector<1x64xf32> to vector<8x64xf32>
    %22 = arith.addf %19, %21 : vector<8x64xf32>
    %cst_17 = arith.constant 0.000000e+00 : f32
    %23 = vector.broadcast %cst_17 : f32 to vector<8x64xf32>
    %24 = arith.maximumf %22, %23 : vector<8x64xf32>
    %25 = arith.truncf %24 : vector<8x64xf32> to vector<8x64xbf16>
    %c0_18 = arith.constant 0 : index
    %c0_19 = arith.constant 0 : index
    %26 = vector.load %arg8[%c0_18, %c0_19] : memref<64x10xbf16, #tpu.memory_space<vmem>>, vector<64x10xbf16>
    %cst_20 = arith.constant dense<0.000000e+00> : vector<8x10xf32>
    %27 = tpu.matmul %25, %26, %cst_20 {dimension_numbers = #tpu.dot_dimension_numbers<[1], [0], [0], [1], [0, 0, 1, 1], [], []>} : vector<8x64xbf16>, vector<64x10xbf16>, vector<8x10xf32> -> vector<8x10xf32>
    %c0_21 = arith.constant 0 : index
    %c0_22 = arith.constant 0 : index
    %28 = vector.load %arg9[%c0_21, %c0_22] : memref<1x10xf32, #tpu.memory_space<vmem>>, vector<1x10xf32>
    %29 = vector.broadcast %28 : vector<1x10xf32> to vector<8x10xf32>
    %30 = arith.addf %27, %29 : vector<8x10xf32>
    %cst_23 = arith.constant dense<0xFF800000> : vector<8xf32>
    %31 = vector.multi_reduction <maximumf>, %30, %cst_23 [1] : vector<8x10xf32> to vector<8xf32>
    %32 = vector.shape_cast %31 : vector<8xf32> to vector<8x1xf32>
    %33 = vector.broadcast %32 : vector<8x1xf32> to vector<8x10xf32>
    %34 = arith.subf %30, %33 : vector<8x10xf32>
    %35 = math.exp %34 : vector<8x10xf32>
    %cst_24 = arith.constant dense<0.000000e+00> : vector<8xf32>
    %36 = vector.multi_reduction <add>, %35, %cst_24 [1] : vector<8x10xf32> to vector<8xf32>
    %37 = vector.shape_cast %36 : vector<8xf32> to vector<8x1xf32>
    %38 = tpu.reciprocal %37 {approx = true} : vector<8x1xf32> -> vector<8x1xf32>
    %39 = vector.broadcast %38 : vector<8x1xf32> to vector<8x10xf32>
    %40 = arith.mulf %35, %39 : vector<8x10xf32>
    %c0_25 = arith.constant 0 : index
    %c0_26 = arith.constant 0 : index
    %41 = vector.load %arg10[%c0_25, %c0_26] : memref<8x10xf32, #tpu.memory_space<vmem>>, vector<8x10xf32>
    tpu.vector_store %arg10[%c0_25, %c0_26], %40 {strides = array<i32>} : memref<8x10xf32, #tpu.memory_space<vmem>>, vector<8x10xf32>,
    return
  }
  func.func @transform_0(%arg0: i32) -> (i32, i32) {
    %c0_i32 = arith.constant 0 : i32
    %c0_i32_0 = arith.constant 0 : i32
    return %arg0, %c0_i32 : i32, i32
  }
  func.func @transform_1(%arg0: i32) -> (i32, i32) {
    %c0_i32 = arith.constant 0 : i32
    %c0_i32_0 = arith.constant 0 : i32
    %c0_i32_1 = arith.constant 0 : i32
    return %c0_i32, %c0_i32_0 : i32, i32
  }
  func.func @transform_2(%arg0: i32) -> (i32, i32) {
    %c0_i32 = arith.constant 0 : i32
    %c0_i32_0 = arith.constant 0 : i32
    %c0_i32_1 = arith.constant 0 : i32
    return %c0_i32, %c0_i32_0 : i32, i32
  }
  func.func @transform_3(%arg0: i32) -> (i32, i32) {
    %c0_i32 = arith.constant 0 : i32
    %c0_i32_0 = arith.constant 0 : i32
    %c0_i32_1 = arith.constant 0 : i32
    return %c0_i32, %c0_i32_0 : i32, i32
  }
  func.func @transform_4(%arg0: i32) -> (i32, i32) {
    %c0_i32 = arith.constant 0 : i32
    %c0_i32_0 = arith.constant 0 : i32
    %c0_i32_1 = arith.constant 0 : i32
    return %c0_i32, %c0_i32_0 : i32, i32
  }
  func.func @transform_5(%arg0: i32) -> (i32, i32) {
    %c0_i32 = arith.constant 0 : i32
    %c0_i32_0 = arith.constant 0 : i32
    %c0_i32_1 = arith.constant 0 : i32
    return %c0_i32, %c0_i32_0 : i32, i32
  }
  func.func @transform_6(%arg0: i32) -> (i32, i32) {
    %c0_i32 = arith.constant 0 : i32
    %c0_i32_0 = arith.constant 0 : i32
    %c0_i32_1 = arith.constant 0 : i32
    return %c0_i32, %c0_i32_0 : i32, i32
  }
  func.func @transform_7(%arg0: i32) -> (i32, i32) {
    %c0_i32 = arith.constant 0 : i32
    %c0_i32_0 = arith.constant 0 : i32
    %c0_i32_1 = arith.constant 0 : i32
    return %c0_i32, %c0_i32_0 : i32, i32
  }
  func.func @transform_8(%arg0: i32) -> (i32, i32) {
    %c0_i32 = arith.constant 0 : i32
    %c0_i32_0 = arith.constant 0 : i32
    %c0_i32_1 = arith.constant 0 : i32
    return %c0_i32, %c0_i32_0 : i32, i32
  }
  func.func @transform_9(%arg0: i32) -> (i32, i32) {
    %c0_i32 = arith.constant 0 : i32
    %c0_i32_0 = arith.constant 0 : i32
    return %arg0, %c0_i32 : i32, i32
  }
}

</mosaic_0001>

<llo_original>
// kernel: mlp_forward.1
$region0: #{mlp_forward.1}
  #allocation0 [shape = 'u32[]', space=smem, size = 0x4, offset = 0x4, fixed_abs, tag = 'smem constant byte address 0x4 - core index']
  #allocation1 [shape = 'u32[144,128]{1,0:T(1,128)}', space=vmem, size = 0x12000, scoped, tag = 'internal scratch']
  %s0 = inlined_call_operand.hbm [shape: f32[8,784], index: 0, kind: input, shape index: {}]
  %s1 = inlined_call_operand.hbm [shape: bf16[784,256], index: 1, kind: input, shape index: {}]
  %s2 = inlined_call_operand.vmem [shape: f32[1,256], index: 2, kind: input, shape index: {}]
  %s3 = inlined_call_operand.vmem [shape: bf16[256,128], index: 3, kind: input, shape index: {}]
  %s4 = inlined_call_operand.hbm [shape: f32[1,128], index: 4, kind: input, shape index: {}]
  %s5 = inlined_call_operand.vmem [shape: bf16[128,64], index: 5, kind: input, shape index: {}]
  %s6 = inlined_call_operand.hbm [shape: f32[1,64], index: 6, kind: input, shape index: {}]
  %s7 = inlined_call_operand.vmem [shape: bf16[64,10], index: 7, kind: input, shape index: {}]
  %s8 = inlined_call_operand.hbm [shape: f32[1,10], index: 8, kind: input, shape index: {}]
  %s9 = inlined_call_operand.hbm [shape: f32[8,10], index: 9, kind: output, shape index: {}]
  %s10 = sld [smem:[#allocation0]]
  $region66: #{mlp_forward.1} parent=0
    _
  %s12 = ssub.s32 1, %s10
  %s13 = scalar_select 0, %s12, %s10
  $region1: #{mlp_forward.1} parent=0
    #allocation2 [shape = 'u8[28672]{0}', space=vmem, size = 0x7000, scoped, tag = 'input window, operand 0, single buffered']
    #allocation3 [shape = 's32[1]{0}', space=sflag, size = 0x4, scoped, tag = 'scoped memory for mlp_forward.1']
    #allocation4 [shape = 's32[1]{0}', space=sflag, size = 0x4, scoped, tag = 'scoped memory for mlp_forward.1']
    #allocation5 [shape = 'u8[401408]{0}', space=vmem, size = 0x62000, scoped, tag = 'input window, operand 1, single buffered']
    #allocation6 [shape = 's32[1]{0}', space=sflag, size = 0x4, scoped, tag = 'scoped memory for mlp_forward.1']
    #allocation7 [shape = 'u8[512]{0}', space=vmem, size = 0x400, scoped, tag = 'input window, operand 4, single buffered']
    #allocation8 [shape = 'u8[512]{0}', space=vmem, size = 0x400, scoped, tag = 'input window, operand 6, single buffered']
    #allocation9 [shape = 's32[1]{0}', space=sflag, size = 0x4, scoped, tag = 'scoped memory for mlp_forward.1']
    #allocation10 [shape = 'u8[512]{0}', space=vmem, size = 0x400, scoped, tag = 'input window, operand 8, single buffered']
    #allocation11 [shape = 'u8[4096]{0}', space=vmem, size = 0x1000, scoped, tag = 'output window, operand 0, single buffered']
    %14 = vsyncpa [#allocation3], 0
    %15 = vsyncpa [#allocation6], 0
    %16 = vsyncpa [#allocation9], 0
    %17 = vsyncpa [#allocation4], 0
    // Predicated region
    $region2: #{mlp_forward.1} parent=1 // pred_check
      _
    $region3: #{mlp_forward.1} parent=1 // pred_check_branch
      %19 = sbr.rel (0) target = $region5
    $region4: #{mlp_forward.1} parent=1 // pred_region
      %s21 = ssub.s32 896, 896
      %22 = vsyncadd [#allocation3], %s21
      %s24 = sshll.u32 [#allocation2], 4
      %s25 = int_to_ptr.vmem [resolvable:$true] %s24
      %27 = dma.hbm_to_vmem [thread:$0]  %s0, 896, %s25, [#allocation3]
    $region5: #{mlp_forward.1} parent=1 // pred_fallthru
      _
    // Predicated region
    $region6: #{mlp_forward.1} parent=1 // pred_check
      _
    $region7: #{mlp_forward.1} parent=1 // pred_check_branch
      %29 = sbr.rel (0) target = $region9
    $region8: #{mlp_forward.1} parent=1 // pred_region
      %s31 = ssub.s32 12544, 12544
      %32 = vsyncadd [#allocation6], %s31
      %s33 = sshll.u32 [#allocation5], 4
      %s34 = int_to_ptr.vmem [resolvable:$true] %s33
      %39 = dma.hbm_to_vmem [thread:$0]  %s1, 12544, %s34, [#allocation6], 128, 128, 8
    $region9: #{mlp_forward.1} parent=1 // pred_fallthru
      _
    // Predicated region
    $region10: #{mlp_forward.1} parent=1 // pred_check
      _
    $region11: #{mlp_forward.1} parent=1 // pred_check_branch
      %41 = sbr.rel (0) target = $region13
    $region12: #{mlp_forward.1} parent=1 // pred_region
      _
    $region13: #{mlp_forward.1} parent=1 // pred_fallthru
      _
    // Predicated region
    $region14: #{mlp_forward.1} parent=1 // pred_check
      _
    $region15: #{mlp_forward.1} parent=1 // pred_check_branch
      %43 = sbr.rel (0) target = $region17
    $region16: #{mlp_forward.1} parent=1 // pred_region
      _
    $region17: #{mlp_forward.1} parent=1 // pred_fallthru
      _
    // Predicated region
    $region18: #{mlp_forward.1} parent=1 // pred_check
      _
    $region19: #{mlp_forward.1} parent=1 // pred_check_branch
      %45 = sbr.rel (0) target = $region21
    $region20: #{mlp_forward.1} parent=1 // pred_region
      %s47 = ssub.s32 16, 16
      %48 = vsyncadd [#allocation6], %s47
      %s50 = sshll.u32 [#allocation7], 4
      %s51 = int_to_ptr.vmem [resolvable:$true] %s50
      %53 = dma.hbm_to_vmem [thread:$0]  %s4, 16, %s51, [#allocation6]
    $region21: #{mlp_forward.1} parent=1 // pred_fallthru
      _
    // Predicated region
    $region22: #{mlp_forward.1} parent=1 // pred_check
      _
    $region23: #{mlp_forward.1} parent=1 // pred_check_branch
      %55 = sbr.rel (0) target = $region25
    $region24: #{mlp_forward.1} parent=1 // pred_region
      _
    $region25: #{mlp_forward.1} parent=1 // pred_fallthru
      _
    // Predicated region
    $region26: #{mlp_forward.1} parent=1 // pred_check
      _
    $region27: #{mlp_forward.1} parent=1 // pred_check_branch
      %57 = sbr.rel (0) target = $region29
    $region28: #{mlp_forward.1} parent=1 // pred_region
      %s59 = ssub.s32 16, 16
      %60 = vsyncadd [#allocation9], %s59
      %s62 = sshll.u32 [#allocation8], 4
      %s63 = int_to_ptr.vmem [resolvable:$true] %s62
      %65 = dma.hbm_to_vmem [thread:$0]  %s6, 16, %s63, [#allocation9]
    $region29: #{mlp_forward.1} parent=1 // pred_fallthru
      _
    // Predicated region
    $region30: #{mlp_forward.1} parent=1 // pred_check
      _
    $region31: #{mlp_forward.1} parent=1 // pred_check_branch
      %67 = sbr.rel (0) target = $region33
    $region32: #{mlp_forward.1} parent=1 // pred_region
      _
    $region33: #{mlp_forward.1} parent=1 // pred_fallthru
      _
    // Predicated region
    $region34: #{mlp_forward.1} parent=1 // pred_check
      _
    $region35: #{mlp_forward.1} parent=1 // pred_check_branch
      %69 = sbr.rel (0) target = $region37
    $region36: #{mlp_forward.1} parent=1 // pred_region
      %s71 = ssub.s32 16, 16
      %72 = vsyncadd [#allocation9], %s71
      %s74 = sshll.u32 [#allocation10], 4
      %s75 = int_to_ptr.vmem [resolvable:$true] %s74
      %77 = dma.hbm_to_vmem [thread:$0]  %s8, 16, %s75, [#allocation9]
    $region37: #{mlp_forward.1} parent=1 // pred_fallthru
      _
    // Predicated region
    $region38: #{mlp_forward.1} parent=1 // pred_check
      _
    $region39: #{mlp_forward.1} parent=1 // pred_check_branch
      %79 = sbr.rel (0) target = $region41
    $region40: #{mlp_forward.1} parent=1 // pred_region
      %80 = dma.done [#allocation3], 896
    $region41: #{mlp_forward.1} parent=1 // pred_fallthru
      _
    // Predicated region
    $region42: #{mlp_forward.1} parent=1 // pred_check
      _
    $region43: #{mlp_forward.1} parent=1 // pred_check_branch
      %82 = sbr.rel (0) target = $region45
    $region44: #{mlp_forward.1} parent=1 // pred_region
      %83 = dma.done [#allocation6], 12544
    $region45: #{mlp_forward.1} parent=1 // pred_fallthru
      _
    // Predicated region
    $region46: #{mlp_forward.1} parent=1 // pred_check
      _
    $region47: #{mlp_forward.1} parent=1 // pred_check_branch
      %85 = sbr.rel (0) target = $region49
    $region48: #{mlp_forward.1} parent=1 // pred_region
      %86 = dma.done [#allocation6], 16
    $region49: #{mlp_forward.1} parent=1 // pred_fallthru
      _
    // Predicated region
    $region50: #{mlp_forward.1} parent=1 // pred_check
      _
    $region51: #{mlp_forward.1} parent=1 // pred_check_branch
      %88 = sbr.rel (0) target = $region53
    $region52: #{mlp_forward.1} parent=1 // pred_region
      %89 = dma.done [#allocation9], 16
    $region53: #{mlp_forward.1} parent=1 // pred_fallthru
      _
    // Predicated region
    $region54: #{mlp_forward.1} parent=1 // pred_check
      _
    $region55: #{mlp_forward.1} parent=1 // pred_check_branch
      %91 = sbr.rel (0) target = $region57
    $region56: #{mlp_forward.1} parent=1 // pred_region
      %92 = dma.done [#allocation9], 16
    $region57: #{mlp_forward.1} parent=1 // pred_fallthru
      _
    %v94 = vld [vmem:[#allocation2] sm:$0xff]
    %v95 = vld [vmem:[#allocation2 + $0x8] sm:$0xff]
    %v96 = vld [vmem:[#allocation2 + $0x10] sm:$0xff]
    %v97 = vld [vmem:[#allocation2 + $0x18] sm:$0xff]
    %v98 = vld [vmem:[#allocation2 + $0x20] sm:$0xff]
    %v99 = vld [vmem:[#allocation2 + $0x28] sm:$0xff]
    %v100 = vld [vmem:[#allocation2 + $0x30] sm:$0xff]
    %v101 = vpack.c.bf16 %v94, %v94
    %v102 = vpack.c.bf16 %v95, %v95
    %v103 = vpack.c.bf16 %v96, %v96
    %v104 = vpack.c.bf16 %v97, %v97
    %v105 = vpack.c.bf16 %v98, %v98
    %v106 = vpack.c.bf16 %v99, %v99
    %v107 = vpack.c.bf16 %v100, %v100
    %v108 = vld [vmem:[#allocation5] sm:$0xff]
    %v109 = vld [vmem:[#allocation5 + $0x8] sm:$0xff]
    %v110 = vld [vmem:[#allocation5 + $0x10] sm:$0xff]
    %v111 = vld [vmem:[#allocation5 + $0x18] sm:$0xff]
    %v112 = vld [vmem:[#allocation5 + $0x20] sm:$0xff]
    %v113 = vld [vmem:[#allocation5 + $0x28] sm:$0xff]
    %v114 = vld [vmem:[#allocation5 + $0x30] sm:$0xff]
    %v115 = vld [vmem:[#allocation5 + $0x38] sm:$0xff]
    %v116 = vld [vmem:[#allocation5 + $0x40] sm:$0xff]
    %v117 = vld [vmem:[#allocation5 + $0x48] sm:$0xff]
    %v118 = vld [vmem:[#allocation5 + $0x50] sm:$0xff]
    %v119 = vld [vmem:[#allocation5 + $0x58] sm:$0xff]
    %v120 = vld [vmem:[#allocation5 + $0x60] sm:$0xff]
    %v121 = vld [vmem:[#allocation5 + $0x68] sm:$0xff]
    %v122 = vld [vmem:[#allocation5 + $0x70] sm:$0xff]
    %v123 = vld [vmem:[#allocation5 + $0x78] sm:$0xff]
    %v124 = vld [vmem:[#allocation5 + $0x80] sm:$0xff]
    %v125 = vld [vmem:[#allocation5 + $0x88] sm:$0xff]
    %v126 = vld [vmem:[#allocation5 + $0x90] sm:$0xff]
    %v127 = vld [vmem:[#allocation5 + $0x98] sm:$0xff]
    %v128 = vld [vmem:[#allocation5 + $0xa0] sm:$0xff]
    %v129 = vld [vmem:[#allocation5 + $0xa8] sm:$0xff]
    %v130 = vld [vmem:[#allocation5 + $0xb0] sm:$0xff]
    %v131 = vld [vmem:[#allocation5 + $0xb8] sm:$0xff]
    %v132 = vld [vmem:[#allocation5 + $0xc0] sm:$0xff]
    %v133 = vld [vmem:[#allocation5 + $0xc8] sm:$0xff]
    %v134 = vld [vmem:[#allocation5 + $0xd0] sm:$0xff]
    %v135 = vld [vmem:[#allocation5 + $0xd8] sm:$0xff]
    %v136 = vld [vmem:[#allocation5 + $0xe0] sm:$0xff]
    %v137 = vld [vmem:[#allocation5 + $0xe8] sm:$0xff]
    %v138 = vld [vmem:[#allocation5 + $0xf0] sm:$0xff]
    %v139 = vld [vmem:[#allocation5 + $0xf8] sm:$0xff]
    %v140 = vld [vmem:[#allocation5 + $0x100] sm:$0xff]
    %v141 = vld [vmem:[#allocation5 + $0x108] sm:$0xff]
    %v142 = vld [vmem:[#allocation5 + $0x110] sm:$0xff]
    %v143 = vld [vmem:[#allocation5 + $0x118] sm:$0xff]
    %v144 = vld [vmem:[#allocation5 + $0x120] sm:$0xff]
    %v145 = vld [vmem:[#allocation5 + $0x128] sm:$0xff]
    %v146 = vld [vmem:[#allocation5 + $0x130] sm:$0xff]
    %v147 = vld [vmem:[#allocation5 + $0x138] sm:$0xff]
    %v148 = vld [vmem:[#allocation5 + $0x140] sm:$0xff]
    %v149 = vld [vmem:[#allocation5 + $0x148] sm:$0xff]
    %v150 = vld [vmem:[#allocation5 + $0x150] sm:$0xff]
    %v151 = vld [vmem:[#allocation5 + $0x158] sm:$0xff]
    %v152 = vld [vmem:[#allocation5 + $0x160] sm:$0xff]
    %v153 = vld [vmem:[#allocation5 + $0x168] sm:$0xff]
    %v154 = vld [vmem:[#allocation5 + $0x170] sm:$0xff]
    %v155 = vld [vmem:[#allocation5 + $0x178] sm:$0xff]
    %v156 = vld [vmem:[#allocation5 + $0x180] sm:$0xff]
    %v157 = vld [vmem:[#allocation5 + $0x188] sm:$0xff]
    %v158 = vld [vmem:[#allocation5 + $0x190] sm:$0xff]
    %v159 = vld [vmem:[#allocation5 + $0x198] sm:$0xff]
    %v160 = vld [vmem:[#allocation5 + $0x1a0] sm:$0xff]
    %v161 = vld [vmem:[#allocation5 + $0x1a8] sm:$0xff]
    %v162 = vld [vmem:[#allocation5 + $0x1b0] sm:$0xff]
    %v163 = vld [vmem:[#allocation5 + $0x1b8] sm:$0xff]
    %v164 = vld [vmem:[#allocation5 + $0x1c0] sm:$0xff]
    %v165 = vld [vmem:[#allocation5 + $0x1c8] sm:$0xff]
    %v166 = vld [vmem:[#allocation5 + $0x1d0] sm:$0xff]
    %v167 = vld [vmem:[#allocation5 + $0x1d8] sm:$0xff]
    %v168 = vld [vmem:[#allocation5 + $0x1e0] sm:$0xff]
    %v169 = vld [vmem:[#allocation5 + $0x1e8] sm:$0xff]
    %v170 = vld [vmem:[#allocation5 + $0x1f0] sm:$0xff]
    %v171 = vld [vmem:[#allocation5 + $0x1f8] sm:$0xff]
    %v172 = vld [vmem:[#allocation5 + $0x200] sm:$0xff]
    %v173 = vld [vmem:[#allocation5 + $0x208] sm:$0xff]
    %v174 = vld [vmem:[#allocation5 + $0x210] sm:$0xff]
    %v175 = vld [vmem:[#allocation5 + $0x218] sm:$0xff]
    %v176 = vld [vmem:[#allocation5 + $0x220] sm:$0xff]
    %v177 = vld [vmem:[#allocation5 + $0x228] sm:$0xff]
    %v178 = vld [vmem:[#allocation5 + $0x230] sm:$0xff]
    %v179 = vld [vmem:[#allocation5 + $0x238] sm:$0xff]
    %v180 = vld [vmem:[#allocation5 + $0x240] sm:$0xff]
    %v181 = vld [vmem:[#allocation5 + $0x248] sm:$0xff]
    %v182 = vld [vmem:[#allocation5 + $0x250] sm:$0xff]
    %v183 = vld [vmem:[#allocation5 + $0x258] sm:$0xff]
    %v184 = vld [vmem:[#allocation5 + $0x260] sm:$0xff]
    %v185 = vld [vmem:[#allocation5 + $0x268] sm:$0xff]
    %v186 = vld [vmem:[#allocation5 + $0x270] sm:$0xff]
    %v187 = vld [vmem:[#allocation5 + $0x278] sm:$0xff]
    %v188 = vld [vmem:[#allocation5 + $0x280] sm:$0xff]
    %v189 = vld [vmem:[#allocation5 + $0x288] sm:$0xff]
    %v190 = vld [vmem:[#allocation5 + $0x290] sm:$0xff]
    %v191 = vld [vmem:[#allocation5 + $0x298] sm:$0xff]
    %v192 = vld [vmem:[#allocation5 + $0x2a0] sm:$0xff]
    %v193 = vld [vmem:[#allocation5 + $0x2a8] sm:$0xff]
    %v194 = vld [vmem:[#allocation5 + $0x2b0] sm:$0xff]
    %v195 = vld [vmem:[#allocation5 + $0x2b8] sm:$0xff]
    %v196 = vld [vmem:[#allocation5 + $0x2c0] sm:$0xff]
    %v197 = vld [vmem:[#allocation5 + $0x2c8] sm:$0xff]
    %v198 = vld [vmem:[#allocation5 + $0x2d0] sm:$0xff]
    %v199 = vld [vmem:[#allocation5 + $0x2d8] sm:$0xff]
    %v200 = vld [vmem:[#allocation5 + $0x2e0] sm:$0xff]
    %v201 = vld [vmem:[#allocation5 + $0x2e8] sm:$0xff]
    %v202 = vld [vmem:[#allocation5 + $0x2f0] sm:$0xff]
    %v203 = vld [vmem:[#allocation5 + $0x2f8] sm:$0xff]
    %v204 = vld [vmem:[#allocation5 + $0x300] sm:$0xff]
    %v205 = vld [vmem:[#allocation5 + $0x308] sm:$0xff]
    %v206 = vld [vmem:[%s2] sm:$0x3]
    %v208 = vlaneseq
    %v209 = vshrl.u32 %v208, 7
    %v210 = vsub.s32 0, %v209
    %v211 = vrot.slane %v206, %v210
    %v212 = vlaneseq
    %v213 = vshrl.u32 %v212, 7
    %v214 = vsub.s32 1, %v213
    %v215 = vrot.slane %v206, %v214
    %v316 = vunpack.c.l.b16 %v108
    %v317 = vunpack.c.h.b16 %v108
    %v318 = vunpack.c.l.b16 %v109
    %v319 = vunpack.c.h.b16 %v109
    %v320 = vunpack.c.l.b16 %v110
    %v321 = vunpack.c.h.b16 %v110
    %v322 = vunpack.c.l.b16 %v111
    %v323 = vunpack.c.h.b16 %v111
    %v324 = vunpack.c.l.b16 %v112
    %v325 = vunpack.c.h.b16 %v112
    %v326 = vunpack.c.l.b16 %v113
    %v327 = vunpack.c.h.b16 %v113
    %v328 = vunpack.c.l.b16 %v114
    %v329 = vunpack.c.h.b16 %v114
    %v330 = vunpack.c.l.b16 %v115
    %v331 = vunpack.c.h.b16 %v115
    %v332 = vunpack.c.l.b16 %v116
    %v333 = vunpack.c.h.b16 %v116
    %v334 = vunpack.c.l.b16 %v117
    %v335 = vunpack.c.h.b16 %v117
    %v336 = vunpack.c.l.b16 %v118
    %v337 = vunpack.c.h.b16 %v118
    %v338 = vunpack.c.l.b16 %v119
    %v339 = vunpack.c.h.b16 %v119
    %v340 = vunpack.c.l.b16 %v120
    %v341 = vunpack.c.h.b16 %v120
    %v342 = vunpack.c.l.b16 %v121
    %v343 = vunpack.c.h.b16 %v121
    %v344 = vunpack.c.l.b16 %v122
    %v345 = vunpack.c.h.b16 %v122
    %v346 = vunpack.c.l.b16 %v123
    %v347 = vunpack.c.h.b16 %v123
    %v348 = vunpack.c.l.b16 %v124
    %v349 = vunpack.c.h.b16 %v124
    %v350 = vunpack.c.l.b16 %v125
    %v351 = vunpack.c.h.b16 %v125
    %v352 = vunpack.c.l.b16 %v126
    %v353 = vunpack.c.h.b16 %v126
    %v354 = vunpack.c.l.b16 %v127
    %v355 = vunpack.c.h.b16 %v127
    %v356 = vunpack.c.l.b16 %v128
    %v357 = vunpack.c.h.b16 %v128
    %v358 = vunpack.c.l.b16 %v129
    %v359 = vunpack.c.h.b16 %v129
    %v360 = vunpack.c.l.b16 %v130
    %v361 = vunpack.c.h.b16 %v130
    %v362 = vunpack.c.l.b16 %v131
    %v363 = vunpack.c.h.b16 %v131
    %v364 = vunpack.c.l.b16 %v132
    %v365 = vunpack.c.h.b16 %v132
    %v366 = vunpack.c.l.b16 %v133
    %v367 = vunpack.c.h.b16 %v133
    %v368 = vunpack.c.l.b16 %v134
    %v369 = vunpack.c.h.b16 %v134
    %v370 = vunpack.c.l.b16 %v135
    %v371 = vunpack.c.h.b16 %v135
    %v372 = vunpack.c.l.b16 %v136
    %v373 = vunpack.c.h.b16 %v136
    %v374 = vunpack.c.l.b16 %v137
    %v375 = vunpack.c.h.b16 %v137
    %v376 = vunpack.c.l.b16 %v138
    %v377 = vunpack.c.h.b16 %v138
    %v378 = vunpack.c.l.b16 %v139
    %v379 = vunpack.c.h.b16 %v139
    %v380 = vunpack.c.l.b16 %v140
    %v381 = vunpack.c.h.b16 %v140
    %v382 = vunpack.c.l.b16 %v141
    %v383 = vunpack.c.h.b16 %v141
    %v384 = vunpack.c.l.b16 %v142
    %v385 = vunpack.c.h.b16 %v142
    %v386 = vunpack.c.l.b16 %v143
    %v387 = vunpack.c.h.b16 %v143
    %v388 = vunpack.c.l.b16 %v144
    %v389 = vunpack.c.h.b16 %v144
    %v390 = vunpack.c.l.b16 %v145
    %v391 = vunpack.c.h.b16 %v145
    %v392 = vunpack.c.l.b16 %v146
    %v393 = vunpack.c.h.b16 %v146
    %v394 = vunpack.c.l.b16 %v147
    %v395 = vunpack.c.h.b16 %v147
    %v396 = vunpack.c.l.b16 %v148
    %v397 = vunpack.c.h.b16 %v148
    %v398 = vunpack.c.l.b16 %v149
    %v399 = vunpack.c.h.b16 %v149
    %v400 = vunpack.c.l.b16 %v150
    %v401 = vunpack.c.h.b16 %v150
    %v402 = vunpack.c.l.b16 %v151
    %v403 = vunpack.c.h.b16 %v151
    %v404 = vunpack.c.l.b16 %v152
    %v405 = vunpack.c.h.b16 %v152
    %v406 = vunpack.c.l.b16 %v153
    %v407 = vunpack.c.h.b16 %v153
    %v408 = vunpack.c.l.b16 %v154
    %v409 = vunpack.c.h.b16 %v154
    %v410 = vunpack.c.l.b16 %v155
    %v411 = vunpack.c.h.b16 %v155
    %v412 = vunpack.c.l.b16 %v156
    %v413 = vunpack.c.h.b16 %v156
    %v414 = vunpack.c.l.b16 %v157
    %v415 = vunpack.c.h.b16 %v157
    %v416 = vunpack.c.l.b16 %v158
    %v417 = vunpack.c.h.b16 %v158
    %v418 = vunpack.c.l.b16 %v159
    %v419 = vunpack.c.h.b16 %v159
    %v420 = vunpack.c.l.b16 %v160
    %v421 = vunpack.c.h.b16 %v160
    %v422 = vunpack.c.l.b16 %v161
    %v423 = vunpack.c.h.b16 %v161
    %v424 = vunpack.c.l.b16 %v162
    %v425 = vunpack.c.h.b16 %v162
    %v426 = vunpack.c.l.b16 %v163
    %v427 = vunpack.c.h.b16 %v163
    %v428 = vunpack.c.l.b16 %v164
    %v429 = vunpack.c.h.b16 %v164
    %v430 = vunpack.c.l.b16 %v165
    %v431 = vunpack.c.h.b16 %v165
    %v432 = vunpack.c.l.b16 %v166
    %v433 = vunpack.c.h.b16 %v166
    %v434 = vunpack.c.l.b16 %v167
    %v435 = vunpack.c.h.b16 %v167
    %v436 = vunpack.c.l.b16 %v168
    %v437 = vunpack.c.h.b16 %v168
    %v438 = vunpack.c.l.b16 %v169
    %v439 = vunpack.c.h.b16 %v169
    %v440 = vunpack.c.l.b16 %v170
    %v441 = vunpack.c.h.b16 %v170
    %v442 = vunpack.c.l.b16 %v171
    %v443 = vunpack.c.h.b16 %v171
    %v444 = vunpack.c.l.b16 %v172
    %v445 = vunpack.c.h.b16 %v172
    %v446 = vunpack.c.l.b16 %v173
    %v447 = vunpack.c.h.b16 %v173
    %v448 = vunpack.c.l.b16 %v174
    %v449 = vunpack.c.h.b16 %v174
    %v450 = vunpack.c.l.b16 %v175
    %v451 = vunpack.c.h.b16 %v175
    %v452 = vunpack.c.l.b16 %v176
    %v453 = vunpack.c.h.b16 %v176
    %v454 = vunpack.c.l.b16 %v177
    %v455 = vunpack.c.h.b16 %v177
    %v456 = vunpack.c.l.b16 %v178
    %v457 = vunpack.c.h.b16 %v178
    %v458 = vunpack.c.l.b16 %v179
    %v459 = vunpack.c.h.b16 %v179
    %v460 = vunpack.c.l.b16 %v180
    %v461 = vunpack.c.h.b16 %v180
    %v462 = vunpack.c.l.b16 %v181
    %v463 = vunpack.c.h.b16 %v181
    %v464 = vunpack.c.l.b16 %v182
    %v465 = vunpack.c.h.b16 %v182
    %v466 = vunpack.c.l.b16 %v183
    %v467 = vunpack.c.h.b16 %v183
    %v468 = vunpack.c.l.b16 %v184
    %v469 = vunpack.c.h.b16 %v184
    %v470 = vunpack.c.l.b16 %v185
    %v471 = vunpack.c.h.b16 %v185
    %v472 = vunpack.c.l.b16 %v186
    %v473 = vunpack.c.h.b16 %v186
    %v474 = vunpack.c.l.b16 %v187
    %v475 = vunpack.c.h.b16 %v187
    %v476 = vunpack.c.l.b16 %v188
    %v477 = vunpack.c.h.b16 %v188
    %v478 = vunpack.c.l.b16 %v189
    %v479 = vunpack.c.h.b16 %v189
    %v480 = vunpack.c.l.b16 %v190
    %v481 = vunpack.c.h.b16 %v190
    %v482 = vunpack.c.l.b16 %v191
    %v483 = vunpack.c.h.b16 %v191
    %v484 = vunpack.c.l.b16 %v192
    %v485 = vunpack.c.h.b16 %v192
    %v486 = vunpack.c.l.b16 %v193
    %v487 = vunpack.c.h.b16 %v193
    %v488 = vunpack.c.l.b16 %v194
    %v489 = vunpack.c.h.b16 %v194
    %v490 = vunpack.c.l.b16 %v195
    %v491 = vunpack.c.h.b16 %v195
    %v492 = vunpack.c.l.b16 %v196
    %v493 = vunpack.c.h.b16 %v196
    %v494 = vunpack.c.l.b16 %v197
    %v495 = vunpack.c.h.b16 %v197
    %v496 = vunpack.c.l.b16 %v198
    %v497 = vunpack.c.h.b16 %v198
    %v498 = vunpack.c.l.b16 %v199
    %v499 = vunpack.c.h.b16 %v199
    %v500 = vunpack.c.l.b16 %v200
    %v501 = vunpack.c.h.b16 %v200
    %v502 = vunpack.c.l.b16 %v201
    %v503 = vunpack.c.h.b16 %v201
    %v504 = vunpack.c.l.b16 %v202
    %v505 = vunpack.c.h.b16 %v202
    %v506 = vunpack.c.l.b16 %v203
    %v507 = vunpack.c.h.b16 %v203
    %v508 = vunpack.c.l.b16 %v204
    %v509 = vunpack.c.h.b16 %v204
    %v510 = vunpack.c.l.b16 %v205
    %v511 = vunpack.c.h.b16 %v205
    %v512 = vpack.c.b16 %v318, %v316
    %v513 = vpack.c.b16 %v319, %v317
    %v514 = vpack.c.b16 %v322, %v320
    %v515 = vpack.c.b16 %v323, %v321
    %v516 = vpack.c.b16 %v326, %v324
    %v517 = vpack.c.b16 %v327, %v325
    %v518 = vpack.c.b16 %v330, %v328
    %v519 = vpack.c.b16 %v331, %v329
    %v520 = vpack.c.b16 %v334, %v332
    %v521 = vpack.c.b16 %v335, %v333
    %v522 = vpack.c.b16 %v338, %v336
    %v523 = vpack.c.b16 %v339, %v337
    %v524 = vpack.c.b16 %v342, %v340
    %v525 = vpack.c.b16 %v343, %v341
    %v526 = vpack.c.b16 %v346, %v344
    %v527 = vpack.c.b16 %v347, %v345
    %v528 = vpack.c.b16 %v350, %v348
    %v529 = vpack.c.b16 %v351, %v349
    %v530 = vpack.c.b16 %v354, %v352
    %v531 = vpack.c.b16 %v355, %v353
    %v532 = vpack.c.b16 %v358, %v356
    %v533 = vpack.c.b16 %v359, %v357
    %v534 = vpack.c.b16 %v362, %v360
    %v535 = vpack.c.b16 %v363, %v361
    %v536 = vpack.c.b16 %v366, %v364
    %v537 = vpack.c.b16 %v367, %v365
    %v538 = vpack.c.b16 %v370, %v368
    %v539 = vpack.c.b16 %v371, %v369
    %v540 = vpack.c.b16 %v374, %v372
    %v541 = vpack.c.b16 %v375, %v373
    %v542 = vpack.c.b16 %v378, %v376
    %v543 = vpack.c.b16 %v379, %v377
    %v544 = vpack.c.b16 %v382, %v380
    %v545 = vpack.c.b16 %v383, %v381
    %v546 = vpack.c.b16 %v386, %v384
    %v547 = vpack.c.b16 %v387, %v385
    %v548 = vpack.c.b16 %v390, %v388
    %v549 = vpack.c.b16 %v391, %v389
    %v550 = vpack.c.b16 %v394, %v392
    %v551 = vpack.c.b16 %v395, %v393
    %v552 = vpack.c.b16 %v398, %v396
    %v553 = vpack.c.b16 %v399, %v397
    %v554 = vpack.c.b16 %v402, %v400
    %v555 = vpack.c.b16 %v403, %v401
    %v556 = vpack.c.b16 %v406, %v404
    %v557 = vpack.c.b16 %v407, %v405
    %v558 = vpack.c.b16 %v410, %v408
    %v559 = vpack.c.b16 %v411, %v409
    %v560 = vpack.c.b16 %v414, %v412
    %v561 = vpack.c.b16 %v415, %v413
    %v562 = vpack.c.b16 %v418, %v416
    %v563 = vpack.c.b16 %v419, %v417
    %v564 = vpack.c.b16 %v422, %v420
    %v565 = vpack.c.b16 %v423, %v421
    %v566 = vpack.c.b16 %v426, %v424
    %v567 = vpack.c.b16 %v427, %v425
    %v568 = vpack.c.b16 %v430, %v428
    %v569 = vpack.c.b16 %v431, %v429
    %v570 = vpack.c.b16 %v434, %v432
    %v571 = vpack.c.b16 %v435, %v433
    %v572 = vpack.c.b16 %v438, %v436
    %v573 = vpack.c.b16 %v439, %v437
    %v574 = vpack.c.b16 %v442, %v440
    %v575 = vpack.c.b16 %v443, %v441
    %v576 = vpack.c.b16 %v446, %v444
    %v577 = vpack.c.b16 %v447, %v445
    %v578 = vpack.c.b16 %v450, %v448
    %v579 = vpack.c.b16 %v451, %v449
    %v580 = vpack.c.b16 %v454, %v452
    %v581 = vpack.c.b16 %v455, %v453
    %v582 = vpack.c.b16 %v458, %v456
    %v583 = vpack.c.b16 %v459, %v457
    %v584 = vpack.c.b16 %v462, %v460
    %v585 = vpack.c.b16 %v463, %v461
    %v586 = vpack.c.b16 %v466, %v464
    %v587 = vpack.c.b16 %v467, %v465
    %v588 = vpack.c.b16 %v470, %v468
    %v589 = vpack.c.b16 %v471, %v469
    %v590 = vpack.c.b16 %v474, %v472
    %v591 = vpack.c.b16 %v475, %v473
    %v592 = vpack.c.b16 %v478, %v476
    %v593 = vpack.c.b16 %v479, %v477
    %v594 = vpack.c.b16 %v482, %v480
    %v595 = vpack.c.b16 %v483, %v481
    %v596 = vpack.c.b16 %v486, %v484
    %v597 = vpack.c.b16 %v487, %v485
    %v598 = vpack.c.b16 %v490, %v488
    %v599 = vpack.c.b16 %v491, %v489
    %v600 = vpack.c.b16 %v494, %v492
    %v601 = vpack.c.b16 %v495, %v493
    %v602 = vpack.c.b16 %v498, %v496
    %v603 = vpack.c.b16 %v499, %v497
    %v604 = vpack.c.b16 %v502, %v500
    %v605 = vpack.c.b16 %v503, %v501
    %v606 = vpack.c.b16 %v506, %v504
    %v607 = vpack.c.b16 %v507, %v505
    %v608 = vpack.c.b16 %v510, %v508
    %v609 = vpack.c.b16 %v511, %v509
    %vm708 = vcmask 130048
    %v710 = vsel %vm708, %v107, 0
    %712 = vmatprep.subr.bf16.mxu0 %v513
    %713 = vmatpush1.bf16.msra.mxu0 %v512
    %714 = vmatprep.subr.bf16.mxu0 %v515
    %715 = vmatpush1.bf16.msra.mxu0 %v514
    %716 = vmatprep.subr.bf16.mxu0 %v517
    %717 = vmatpush1.bf16.msra.mxu0 %v516
    %718 = vmatprep.subr.bf16.mxu0 %v519
    %719 = vmatpush1.bf16.msra.mxu0 %v518
    %720 = vmatprep.subr.bf16.mxu0 %v521
    %721 = vmatpush1.bf16.msra.mxu0 %v520
    %722 = vmatprep.subr.bf16.mxu0 %v523
    %723 = vmatpush1.bf16.msra.mxu0 %v522
    %724 = vmatprep.subr.bf16.mxu0 %v525
    %725 = vmatpush1.bf16.msra.mxu0 %v524
    %726 = vmatprep.subr.bf16.mxu0 %v527
    %727 = vmatpush1.bf16.msra.mxu0 %v526
    %728 = vmatprep.subr.bf16.mxu0 %v529
    %729 = vmatpush1.bf16.msra.mxu0 %v528
    %730 = vmatprep.subr.bf16.mxu0 %v531
    %731 = vmatpush1.bf16.msra.mxu0 %v530
    %732 = vmatprep.subr.bf16.mxu0 %v533
    %733 = vmatpush1.bf16.msra.mxu0 %v532
    %734 = vmatprep.subr.bf16.mxu0 %v535
    %735 = vmatpush1.bf16.msra.mxu0 %v534
    %736 = vmatprep.subr.bf16.mxu0 %v537
    %737 = vmatpush1.bf16.msra.mxu0 %v536
    %738 = vmatprep.subr.bf16.mxu0 %v539
    %739 = vmatpush1.bf16.msra.mxu0 %v538
    %740 = vmatprep.subr.bf16.mxu0 %v541
    %741 = vmatpush1.bf16.msra.mxu0 %v540
    %742 = vmatprep.subr.bf16.mxu0 %v543
    %743 = vmatpush1.bf16.msra.mxu0 %v542
    %744 = vmatprep.mubr.bf16.mxu0 %v102
    %745 = vmatmul.mubr.bf16.gmra.mrb[0].mxu0 %v101
    %v746 = vpop.f32.mrb[0].mxu0
    %v747 = vadd.f32 %v211, %v746
    %v748 = vpop.f32.mrb[0].mxu0
    %v749 = vadd.f32 %v215, %v748
    %v750 = vpop.f32.mrb[0].mxu0
    %v751 = vpop.f32.mrb[0].mxu0
    %752 = vdwg.mxu0
    %753 = vmatprep.subr.bf16.mxu0 %v545
    %754 = vmatpush1.bf16.msra.mxu0 %v544
    %755 = vmatprep.subr.bf16.mxu0 %v547
    %756 = vmatpush1.bf16.msra.mxu0 %v546
    %757 = vmatprep.subr.bf16.mxu0 %v549
    %758 = vmatpush1.bf16.msra.mxu0 %v548
    %759 = vmatprep.subr.bf16.mxu0 %v551
    %760 = vmatpush1.bf16.msra.mxu0 %v550
    %761 = vmatprep.subr.bf16.mxu0 %v553
    %762 = vmatpush1.bf16.msra.mxu0 %v552
    %763 = vmatprep.subr.bf16.mxu0 %v555
    %764 = vmatpush1.bf16.msra.mxu0 %v554
    %765 = vmatprep.subr.bf16.mxu0 %v557
    %766 = vmatpush1.bf16.msra.mxu0 %v556
    %767 = vmatprep.subr.bf16.mxu0 %v559
    %768 = vmatpush1.bf16.msra.mxu0 %v558
    %769 = vmatprep.subr.bf16.mxu0 %v561
    %770 = vmatpush1.bf16.msra.mxu0 %v560
    %771 = vmatprep.subr.bf16.mxu0 %v563
    %772 = vmatpush1.bf16.msra.mxu0 %v562
    %773 = vmatprep.subr.bf16.mxu0 %v565
    %774 = vmatpush1.bf16.msra.mxu0 %v564
    %775 = vmatprep.subr.bf16.mxu0 %v567
    %776 = vmatpush1.bf16.msra.mxu0 %v566
    %777 = vmatprep.subr.bf16.mxu0 %v569
    %778 = vmatpush1.bf16.msra.mxu0 %v568
    %779 = vmatprep.subr.bf16.mxu0 %v571
    %780 = vmatpush1.bf16.msra.mxu0 %v570
    %781 = vmatprep.subr.bf16.mxu0 %v573
    %782 = vmatpush1.bf16.msra.mxu0 %v572
    %783 = vmatprep.subr.bf16.mxu0 %v575
    %784 = vmatpush1.bf16.msra.mxu0 %v574
    %785 = vmatprep.mubr.bf16.mxu0 %v104
    %786 = vmatmul.mubr.bf16.gmra.mrb[0].mxu0 %v103
    %v787 = vpop.f32.mrb[0].mxu0
    %v788 = vadd.f32 %v747, %v787
    %v789 = vpop.f32.mrb[0].mxu0
    %v790 = vadd.f32 %v749, %v789
    %v791 = vpop.f32.mrb[0].mxu0
    %v792 = vpop.f32.mrb[0].mxu0
    %793 = vdwg.mxu0
    %794 = vmatprep.subr.bf16.mxu0 %v577
    %795 = vmatpush1.bf16.msra.mxu0 %v576
    %796 = vmatprep.subr.bf16.mxu0 %v579
    %797 = vmatpush1.bf16.msra.mxu0 %v578
    %798 = vmatprep.subr.bf16.mxu0 %v581
    %799 = vmatpush1.bf16.msra.mxu0 %v580
    %800 = vmatprep.subr.bf16.mxu0 %v583
    %801 = vmatpush1.bf16.msra.mxu0 %v582
    %802 = vmatprep.subr.bf16.mxu0 %v585
    %803 = vmatpush1.bf16.msra.mxu0 %v584
    %804 = vmatprep.subr.bf16.mxu0 %v587
    %805 = vmatpush1.bf16.msra.mxu0 %v586
    %806 = vmatprep.subr.bf16.mxu0 %v589
    %807 = vmatpush1.bf16.msra.mxu0 %v588
    %808 = vmatprep.subr.bf16.mxu0 %v591
    %809 = vmatpush1.bf16.msra.mxu0 %v590
    %810 = vmatprep.subr.bf16.mxu0 %v593
    %811 = vmatpush1.bf16.msra.mxu0 %v592
    %812 = vmatprep.subr.bf16.mxu0 %v595
    %813 = vmatpush1.bf16.msra.mxu0 %v594
    %814 = vmatprep.subr.bf16.mxu0 %v597
    %815 = vmatpush1.bf16.msra.mxu0 %v596
    %816 = vmatprep.subr.bf16.mxu0 %v599
    %817 = vmatpush1.bf16.msra.mxu0 %v598
    %818 = vmatprep.subr.bf16.mxu0 %v601
    %819 = vmatpush1.bf16.msra.mxu0 %v600
    %820 = vmatprep.subr.bf16.mxu0 %v603
    %821 = vmatpush1.bf16.msra.mxu0 %v602
    %822 = vmatprep.subr.bf16.mxu0 %v605
    %823 = vmatpush1.bf16.msra.mxu0 %v604
    %824 = vmatprep.subr.bf16.mxu0 %v607
    %825 = vmatpush1.bf16.msra.mxu0 %v606
    %826 = vmatprep.mubr.bf16.mxu0 %v106
    %827 = vmatmul.mubr.bf16.gmra.mrb[0].mxu0 %v105
    %v828 = vpop.f32.mrb[0].mxu0
    %v829 = vadd.f32 %v788, %v828
    %v830 = vpop.f32.mrb[0].mxu0
    %v831 = vadd.f32 %v790, %v830
    %v832 = vpop.f32.mrb[0].mxu0
    %v833 = vpop.f32.mrb[0].mxu0
    %834 = vdwg.mxu0
    %835 = vmatprep.subr.bf16.mxu0 %v609
    %836 = vmatpush1.bf16.msra.mxu0 %v608
    %837 = vmatprep.subr.bf16.mxu0 0
    %838 = vmatpush1.bf16.msra.mxu0 0
    %839 = vmatprep.subr.bf16.mxu0 0
    %840 = vmatpush1.bf16.msra.mxu0 0
    %841 = vmatprep.subr.bf16.mxu0 0
    %842 = vmatpush1.bf16.msra.mxu0 0
    %843 = vmatprep.subr.bf16.mxu0 0
    %844 = vmatpush1.bf16.msra.mxu0 0
    %845 = vmatprep.subr.bf16.mxu0 0
    %846 = vmatpush1.bf16.msra.mxu0 0
    %847 = vmatprep.subr.bf16.mxu0 0
    %848 = vmatpush1.bf16.msra.mxu0 0
    %849 = vmatprep.subr.bf16.mxu0 0
    %850 = vmatpush1.bf16.msra.mxu0 0
    %851 = vmatprep.subr.bf16.mxu0 0
    %852 = vmatpush1.bf16.msra.mxu0 0
    %853 = vmatprep.subr.bf16.mxu0 0
    %854 = vmatpush1.bf16.msra.mxu0 0
    %855 = vmatprep.subr.bf16.mxu0 0
    %856 = vmatpush1.bf16.msra.mxu0 0
    %857 = vmatprep.subr.bf16.mxu0 0
    %858 = vmatpush1.bf16.msra.mxu0 0
    %859 = vmatprep.subr.bf16.mxu0 0
    %860 = vmatpush1.bf16.msra.mxu0 0
    %861 = vmatprep.subr.bf16.mxu0 0
    %862 = vmatpush1.bf16.msra.mxu0 0
    %863 = vmatprep.subr.bf16.mxu0 0
    %864 = vmatpush1.bf16.msra.mxu0 0
    %865 = vmatprep.subr.bf16.mxu0 0
    %866 = vmatpush1.bf16.msra.mxu0 0
    %867 = vmatprep.mubr.bf16.mxu0 0
    %868 = vmatmul.mubr.bf16.gmra.mrb[0].mxu0 %v710
    %v869 = vpop.f32.mrb[0].mxu0
    %v870 = vadd.f32 %v829, %v869
    %v871 = vpop.f32.mrb[0].mxu0
    %v872 = vadd.f32 %v831, %v871
    %v873 = vpop.f32.mrb[0].mxu0
    %v874 = vpop.f32.mrb[0].mxu0
    %875 = vdwg.mxu0
    %v876 = vmax.f32 %v870, 0.0
    %v877 = vmax.f32 %v872, 0.0
    %v878 = vpack.c.bf16 %v876, %v876
    %v879 = vpack.c.bf16 %v877, %v877
    %v880 = vld [vmem:[%s3] sm:$0xf]
    %v881 = vld [vmem:[%s3 + $0x4] sm:$0xf]
    %v882 = vld [vmem:[%s3 + $0x8] sm:$0xf]
    %v883 = vld [vmem:[%s3 + $0xc] sm:$0xf]
    %v884 = vld [vmem:[%s3 + $0x10] sm:$0xf]
    %v885 = vld [vmem:[%s3 + $0x14] sm:$0xf]
    %v886 = vld [vmem:[%s3 + $0x18] sm:$0xf]
    %v887 = vld [vmem:[%s3 + $0x1c] sm:$0xf]
    %v888 = vld [vmem:[%s3 + $0x20] sm:$0xf]
    %v889 = vld [vmem:[%s3 + $0x24] sm:$0xf]
    %v890 = vld [vmem:[%s3 + $0x28] sm:$0xf]
    %v891 = vld [vmem:[%s3 + $0x2c] sm:$0xf]
    %v892 = vld [vmem:[%s3 + $0x30] sm:$0xf]
    %v893 = vld [vmem:[%s3 + $0x34] sm:$0xf]
    %v894 = vld [vmem:[%s3 + $0x38] sm:$0xf]
    %v895 = vld [vmem:[%s3 + $0x3c] sm:$0xf]
    %v896 = vld [vmem:[%s3 + $0x40] sm:$0xf]
    %v897 = vld [vmem:[%s3 + $0x44] sm:$0xf]
    %v898 = vld [vmem:[%s3 + $0x48] sm:$0xf]
    %v899 = vld [vmem:[%s3 + $0x4c] sm:$0xf]
    %v900 = vld [vmem:[%s3 + $0x50] sm:$0xf]
    %v901 = vld [vmem:[%s3 + $0x54] sm:$0xf]
    %v902 = vld [vmem:[%s3 + $0x58] sm:$0xf]
    %v903 = vld [vmem:[%s3 + $0x5c] sm:$0xf]
    %v904 = vld [vmem:[%s3 + $0x60] sm:$0xf]
    %v905 = vld [vmem:[%s3 + $0x64] sm:$0xf]
    %v906 = vld [vmem:[%s3 + $0x68] sm:$0xf]
    %v907 = vld [vmem:[%s3 + $0x6c] sm:$0xf]
    %v908 = vld [vmem:[%s3 + $0x70] sm:$0xf]
    %v909 = vld [vmem:[%s3 + $0x74] sm:$0xf]
    %v910 = vld [vmem:[%s3 + $0x78] sm:$0xf]
    %v911 = vld [vmem:[%s3 + $0x7c] sm:$0xf]
    %v912 = vld [vmem:[#allocation7] sm:$0x1]
    %v914 = vlaneseq
    %v915 = vshrl.u32 %v914, 7
    %v916 = vsub.s32 0, %v915
    %v917 = vrot.slane %v912, %v916
    %v951 = vunpack.c.l.b16 %v880
    %v952 = vunpack.c.l.b16 %v881
    %v953 = vunpack.c.l.b16 %v882
    %v954 = vunpack.c.l.b16 %v883
    %v955 = vunpack.c.l.b16 %v884
    %v956 = vunpack.c.l.b16 %v885
    %v957 = vunpack.c.l.b16 %v886
    %v958 = vunpack.c.l.b16 %v887
    %v959 = vunpack.c.l.b16 %v888
    %v960 = vunpack.c.l.b16 %v889
    %v961 = vunpack.c.l.b16 %v890
    %v962 = vunpack.c.l.b16 %v891
    %v963 = vunpack.c.l.b16 %v892
    %v964 = vunpack.c.l.b16 %v893
    %v965 = vunpack.c.l.b16 %v894
    %v966 = vunpack.c.l.b16 %v895
    %v967 = vunpack.c.l.b16 %v896
    %v968 = vunpack.c.l.b16 %v897
    %v969 = vunpack.c.l.b16 %v898
    %v970 = vunpack.c.l.b16 %v899
    %v971 = vunpack.c.l.b16 %v900
    %v972 = vunpack.c.l.b16 %v901
    %v973 = vunpack.c.l.b16 %v902
    %v974 = vunpack.c.l.b16 %v903
    %v975 = vunpack.c.l.b16 %v904
    %v976 = vunpack.c.l.b16 %v905
    %v977 = vunpack.c.l.b16 %v906
    %v978 = vunpack.c.l.b16 %v907
    %v979 = vunpack.c.l.b16 %v908
    %v980 = vunpack.c.l.b16 %v909
    %v981 = vunpack.c.l.b16 %v910
    %v982 = vunpack.c.l.b16 %v911
    %v983 = vpack.c.b16 %v952, %v951
    %v984 = vpack.c.b16 %v954, %v953
    %v985 = vpack.c.b16 %v956, %v955
    %v986 = vpack.c.b16 %v958, %v957
    %v987 = vpack.c.b16 %v960, %v959
    %v988 = vpack.c.b16 %v962, %v961
    %v989 = vpack.c.b16 %v964, %v963
    %v990 = vpack.c.b16 %v966, %v965
    %v991 = vpack.c.b16 %v968, %v967
    %v992 = vpack.c.b16 %v970, %v969
    %v993 = vpack.c.b16 %v972, %v971
    %v994 = vpack.c.b16 %v974, %v973
    %v995 = vpack.c.b16 %v976, %v975
    %v996 = vpack.c.b16 %v978, %v977
    %v997 = vpack.c.b16 %v980, %v979
    %v998 = vpack.c.b16 %v982, %v981
    %1015 = vmatprep.subr.bf16.mxu0 0
    %1016 = vmatpush1.bf16.msra.mxu0 %v983
    %1017 = vmatprep.subr.bf16.mxu0 0
    %1018 = vmatpush1.bf16.msra.mxu0 %v984
    %1019 = vmatprep.subr.bf16.mxu0 0
    %1020 = vmatpush1.bf16.msra.mxu0 %v985
    %1021 = vmatprep.subr.bf16.mxu0 0
    %1022 = vmatpush1.bf16.msra.mxu0 %v986
    %1023 = vmatprep.subr.bf16.mxu0 0
    %1024 = vmatpush1.bf16.msra.mxu0 %v987
    %1025 = vmatprep.subr.bf16.mxu0 0
    %1026 = vmatpush1.bf16.msra.mxu0 %v988
    %1027 = vmatprep.subr.bf16.mxu0 0
    %1028 = vmatpush1.bf16.msra.mxu0 %v989
    %1029 = vmatprep.subr.bf16.mxu0 0
    %1030 = vmatpush1.bf16.msra.mxu0 %v990
    %1031 = vmatprep.subr.bf16.mxu0 0
    %1032 = vmatpush1.bf16.msra.mxu0 %v991
    %1033 = vmatprep.subr.bf16.mxu0 0
    %1034 = vmatpush1.bf16.msra.mxu0 %v992
    %1035 = vmatprep.subr.bf16.mxu0 0
    %1036 = vmatpush1.bf16.msra.mxu0 %v993
    %1037 = vmatprep.subr.bf16.mxu0 0
    %1038 = vmatpush1.bf16.msra.mxu0 %v994
    %1039 = vmatprep.subr.bf16.mxu0 0
    %1040 = vmatpush1.bf16.msra.mxu0 %v995
    %1041 = vmatprep.subr.bf16.mxu0 0
    %1042 = vmatpush1.bf16.msra.mxu0 %v996
    %1043 = vmatprep.subr.bf16.mxu0 0
    %1044 = vmatpush1.bf16.msra.mxu0 %v997
    %1045 = vmatprep.subr.bf16.mxu0 0
    %1046 = vmatpush1.bf16.msra.mxu0 %v998
    %1047 = vmatprep.mubr.bf16.mxu0 %v879
    %1048 = vmatmul.mubr.bf16.gmra.mrb[0].mxu0 %v878
    %v1049 = vpop.f32.mrb[0].mxu0
    %v1050 = vadd.f32 %v917, %v1049
    %v1051 = vpop.f32.mrb[0].mxu0
    %v1052 = vpop.f32.mrb[0].mxu0
    %v1053 = vpop.f32.mrb[0].mxu0
    %1054 = vdwg.mxu0
    %v1055 = vmax.f32 %v1050, 0.0
    %v1056 = vpack.c.bf16 %v1055, %v1055
    %v1057 = vld [vmem:[%s5] sm:$0xf]
    %v1058 = vld [vmem:[%s5 + $0x4] sm:$0xf]
    %v1059 = vld [vmem:[%s5 + $0x8] sm:$0xf]
    %v1060 = vld [vmem:[%s5 + $0xc] sm:$0xf]
    %v1061 = vld [vmem:[%s5 + $0x10] sm:$0xf]
    %v1062 = vld [vmem:[%s5 + $0x14] sm:$0xf]
    %v1063 = vld [vmem:[%s5 + $0x18] sm:$0xf]
    %v1064 = vld [vmem:[%s5 + $0x1c] sm:$0xf]
    %v1065 = vld [vmem:[%s5 + $0x20] sm:$0xf]
    %v1066 = vld [vmem:[%s5 + $0x24] sm:$0xf]
    %v1067 = vld [vmem:[%s5 + $0x28] sm:$0xf]
    %v1068 = vld [vmem:[%s5 + $0x2c] sm:$0xf]
    %v1069 = vld [vmem:[%s5 + $0x30] sm:$0xf]
    %v1070 = vld [vmem:[%s5 + $0x34] sm:$0xf]
    %v1071 = vld [vmem:[%s5 + $0x38] sm:$0xf]
    %v1072 = vld [vmem:[%s5 + $0x3c] sm:$0xf]
    %v1073 = vld [vmem:[#allocation8] sm:$0x1]
    %v1075 = vlaneseq
    %v1076 = vshrl.u32 %v1075, 7
    %v1077 = vsub.s32 0, %v1076
    %v1078 = vrot.slane %v1073, %v1077
    %v1096 = vunpack.c.l.b16 %v1057
    %v1097 = vunpack.c.l.b16 %v1058
    %v1098 = vunpack.c.l.b16 %v1059
    %v1099 = vunpack.c.l.b16 %v1060
    %v1100 = vunpack.c.l.b16 %v1061
    %v1101 = vunpack.c.l.b16 %v1062
    %v1102 = vunpack.c.l.b16 %v1063
    %v1103 = vunpack.c.l.b16 %v1064
    %v1104 = vunpack.c.l.b16 %v1065
    %v1105 = vunpack.c.l.b16 %v1066
    %v1106 = vunpack.c.l.b16 %v1067
    %v1107 = vunpack.c.l.b16 %v1068
    %v1108 = vunpack.c.l.b16 %v1069
    %v1109 = vunpack.c.l.b16 %v1070
    %v1110 = vunpack.c.l.b16 %v1071
    %v1111 = vunpack.c.l.b16 %v1072
    %v1112 = vpack.c.b16 %v1097, %v1096
    %v1113 = vpack.c.b16 %v1099, %v1098
    %v1114 = vpack.c.b16 %v1101, %v1100
    %v1115 = vpack.c.b16 %v1103, %v1102
    %v1116 = vpack.c.b16 %v1105, %v1104
    %v1117 = vpack.c.b16 %v1107, %v1106
    %v1118 = vpack.c.b16 %v1109, %v1108
    %v1119 = vpack.c.b16 %v1111, %v1110
    %1128 = vmatprep.subr.bf16.mxu0 0
    %1129 = vmatpush1.bf16.msra.mxu0 %v1112
    %1130 = vmatprep.subr.bf16.mxu0 0
    %1131 = vmatpush1.bf16.msra.mxu0 %v1113
    %1132 = vmatprep.subr.bf16.mxu0 0
    %1133 = vmatpush1.bf16.msra.mxu0 %v1114
    %1134 = vmatprep.subr.bf16.mxu0 0
    %1135 = vmatpush1.bf16.msra.mxu0 %v1115
    %1136 = vmatprep.subr.bf16.mxu0 0
    %1137 = vmatpush1.bf16.msra.mxu0 %v1116
    %1138 = vmatprep.subr.bf16.mxu0 0
    %1139 = vmatpush1.bf16.msra.mxu0 %v1117
    %1140 = vmatprep.subr.bf16.mxu0 0
    %1141 = vmatpush1.bf16.msra.mxu0 %v1118
    %1142 = vmatprep.subr.bf16.mxu0 0
    %1143 = vmatpush1.bf16.msra.mxu0 %v1119
    %1144 = vmatprep.subr.bf16.mxu0 0
    %1145 = vmatpush1.bf16.msra.mxu0 0
    %1146 = vmatprep.subr.bf16.mxu0 0
    %1147 = vmatpush1.bf16.msra.mxu0 0
    %1148 = vmatprep.subr.bf16.mxu0 0
    %1149 = vmatpush1.bf16.msra.mxu0 0
    %1150 = vmatprep.subr.bf16.mxu0 0
    %1151 = vmatpush1.bf16.msra.mxu0 0
    %1152 = vmatprep.subr.bf16.mxu0 0
    %1153 = vmatpush1.bf16.msra.mxu0 0
    %1154 = vmatprep.subr.bf16.mxu0 0
    %1155 = vmatpush1.bf16.msra.mxu0 0
    %1156 = vmatprep.subr.bf16.mxu0 0
    %1157 = vmatpush1.bf16.msra.mxu0 0
    %1158 = vmatprep.subr.bf16.mxu0 0
    %1159 = vmatpush1.bf16.msra.mxu0 0
    %1160 = vmatprep.mubr.bf16.mxu0 0
    %1161 = vmatmul.mubr.bf16.gmra.mrb[0].mxu0 %v1056
    %v1162 = vpop.f32.mrb[0].mxu0
    %v1163 = vadd.f32 %v1078, %v1162
    %v1164 = vpop.f32.mrb[0].mxu0
    %v1165 = vpop.f32.mrb[0].mxu0
    %v1166 = vpop.f32.mrb[0].mxu0
    %1167 = vdwg.mxu0
    %v1168 = vmax.f32 %v1163, 0.0
    %v1169 = vpack.c.bf16 %v1168, %v1168
    %v1170 = vld [vmem:[%s7] sm:$0xf]
    %v1171 = vld [vmem:[%s7 + $0x4] sm:$0xf]
    %v1172 = vld [vmem:[%s7 + $0x8] sm:$0xf]
    %v1173 = vld [vmem:[%s7 + $0xc] sm:$0xf]
    %v1174 = vld [vmem:[%s7 + $0x10] sm:$0xf]
    %v1175 = vld [vmem:[%s7 + $0x14] sm:$0xf]
    %v1176 = vld [vmem:[%s7 + $0x18] sm:$0xf]
    %v1177 = vld [vmem:[%s7 + $0x1c] sm:$0xf]
    %v1178 = vld [vmem:[#allocation10] sm:$0x1]
    %v1180 = vlaneseq
    %v1181 = vshrl.u32 %v1180, 7
    %v1182 = vsub.s32 0, %v1181
    %v1183 = vrot.slane %v1178, %v1182
    %v1193 = vunpack.c.l.b16 %v1170
    %v1194 = vunpack.c.l.b16 %v1171
    %v1195 = vunpack.c.l.b16 %v1172
    %v1196 = vunpack.c.l.b16 %v1173
    %v1197 = vunpack.c.l.b16 %v1174
    %v1198 = vunpack.c.l.b16 %v1175
    %v1199 = vunpack.c.l.b16 %v1176
    %v1200 = vunpack.c.l.b16 %v1177
    %v1201 = vpack.c.b16 %v1194, %v1193
    %v1202 = vpack.c.b16 %v1196, %v1195
    %v1203 = vpack.c.b16 %v1198, %v1197
    %v1204 = vpack.c.b16 %v1200, %v1199
    %vm1209 = vcmask 523264
    %v1211 = vsel %vm1209, %v1169, 0
    %1213 = vmatprep.subr.bf16.mxu0 0
    %1214 = vmatpush1.bf16.msra.mxu0 %v1201
    %1215 = vmatprep.subr.bf16.mxu0 0
    %1216 = vmatpush1.bf16.msra.mxu0 %v1202
    %1217 = vmatprep.subr.bf16.mxu0 0
    %1218 = vmatpush1.bf16.msra.mxu0 %v1203
    %1219 = vmatprep.subr.bf16.mxu0 0
    %1220 = vmatpush1.bf16.msra.mxu0 %v1204
    %1221 = vmatprep.subr.bf16.mxu0 0
    %1222 = vmatpush1.bf16.msra.mxu0 0
    %1223 = vmatprep.subr.bf16.mxu0 0
    %1224 = vmatpush1.bf16.msra.mxu0 0
    %1225 = vmatprep.subr.bf16.mxu0 0
    %1226 = vmatpush1.bf16.msra.mxu0 0
    %1227 = vmatprep.subr.bf16.mxu0 0
    %1228 = vmatpush1.bf16.msra.mxu0 0
    %1229 = vmatprep.subr.bf16.mxu0 0
    %1230 = vmatpush1.bf16.msra.mxu0 0
    %1231 = vmatprep.subr.bf16.mxu0 0
    %1232 = vmatpush1.bf16.msra.mxu0 0
    %1233 = vmatprep.subr.bf16.mxu0 0
    %1234 = vmatpush1.bf16.msra.mxu0 0
    %1235 = vmatprep.subr.bf16.mxu0 0
    %1236 = vmatpush1.bf16.msra.mxu0 0
    %1237 = vmatprep.subr.bf16.mxu0 0
    %1238 = vmatpush1.bf16.msra.mxu0 0
    %1239 = vmatprep.subr.bf16.mxu0 0
    %1240 = vmatpush1.bf16.msra.mxu0 0
    %1241 = vmatprep.subr.bf16.mxu0 0
    %1242 = vmatpush1.bf16.msra.mxu0 0
    %1243 = vmatprep.subr.bf16.mxu0 0
    %1244 = vmatpush1.bf16.msra.mxu0 0
    %1245 = vmatprep.mubr.bf16.mxu0 0
    %1246 = vmatmul.mubr.bf16.gmra.mrb[0].mxu0 %v1211
    %v1247 = vpop.f32.mrb[0].mxu0
    %v1248 = vadd.f32 %v1183, %v1247
    %v1249 = vpop.f32.mrb[0].mxu0
    %v1250 = vpop.f32.mrb[0].mxu0
    %v1251 = vpop.f32.mrb[0].mxu0
    %1252 = vdwg.mxu0
    %vm1253 = vcmask 80896
    %v1254 = vsel %vm1253, %v1248, -inf
    %1255 = vmax.xlane.f32.xlu0 %v1254
    %v1256 = vpop.xlane.xlu0 %1255
    %v1257 = vsub.f32 %v1248, %v1256
    %v1258 = vmul.f32 %v1257, 1.442695
    %v1259 = vpow.pop %v1258
    %v1260 = vsel %vm1253, %v1259, 0.0
    %1261 = vadd.xlane.f32.xlu0 %v1260
    %v1262 = vpop.xlane.xlu0 %1261
    %v1263 = vrcp.pop %v1262
    %v1264 = vmul.f32 %v1259, %v1263
    %1265 = vst.msk [vmem:[#allocation11] sm:$0xff] %vm1253, %v1264
    // Predicated region
    $region58: #{mlp_forward.1} parent=1 // pred_check
      _
    $region59: #{mlp_forward.1} parent=1 // pred_check_branch
      %1267 = sbr.rel (0) target = $region61
    $region60: #{mlp_forward.1} parent=1 // pred_region
      %s1269 = ssub.s32 128, 128
      %1270 = vsyncadd [#allocation4], %s1269
      %s1272 = sshll.u32 [#allocation11], 4
      %s1273 = int_to_ptr.vmem [resolvable:$true] %s1272
      %1275 = dma.vmem_to_hbm [thread:$0]  %s1273, 128, %s9, [#allocation4]
    $region61: #{mlp_forward.1} parent=1 // pred_fallthru
      _
    // Predicated region
    $region62: #{mlp_forward.1} parent=1 // pred_check
      _
    $region63: #{mlp_forward.1} parent=1 // pred_check_branch
      %1277 = sbr.rel (0) target = $region65
    $region64: #{mlp_forward.1} parent=1 // pred_region
      %1278 = dma.done [#allocation4], 128
    $region65: #{mlp_forward.1} parent=1 // pred_fallthru
      _
    %1279 = vsyncpa [#allocation3], 1
    %1280 = vsyncpa [#allocation6], 1
    %1281 = vsyncpa [#allocation9], 1
    %1282 = vsyncpa [#allocation4], 1

</llo_original>
